<compile_context>
chip_gen: v7x
topology: tpu7x:2x2x1
jax: 0.10.0
libtpu: 0.0.40
codegen_flags: <defaults>
</compile_context>

<pallas_src>
import functools
import math

import jax
import jax.numpy as jnp
from jax.experimental import pallas as pl
from jax.experimental.pallas import tpu as pltpu


# ------------------------------- kernel ------------------------------------


def _sage_gcn_kernel(adj_ref, x_ref, inv_deg_ref, w_ref, b_ref, out_ref, acc_ref,
                     *, apply_relu: bool):
    """One SAGEConv('gcn') layer for one destination-row tile.

    Grid: (row tiles [parallel], contraction tiles over source nodes [arbitrary]).
    adj_ref:     (tm, tk)  bf16 tile of (A + I)
    x_ref:       (tk, F)   f32 source-node features for this contraction tile
    inv_deg_ref: (tm, 1)   f32 1 / (in_degree + 1) for this row tile
    w_ref:       (F, O)    f32 fc_neigh weight (pre-transposed, full-resident)
    b_ref:       (1, O)    f32 layer bias
    out_ref:     (tm, O)   f32 output row tile (resident across the contraction axis)
    acc_ref:     (tm, F)   f32 VMEM scratch aggregation accumulator
    """
    k = pl.program_id(1)

    @pl.when(k == 0)
    def _():
        acc_ref[...] = jnp.zeros_like(acc_ref)

    # Aggregate neighbours (and self via the +I fold):  acc += A_hat_tile @ x_tile.
    # adj values are exactly 0/1, so the bf16 storage is lossless; upcast to f32
    # so the accumulation stays exact.
    acc_ref[...] += jnp.dot(adj_ref[...].astype(jnp.float32), x_ref[...],
                            preferred_element_type=jnp.float32)

    @pl.when(k == pl.num_programs(1) - 1)
    def _():
        # mean aggregation: (sum_neigh + self) / (deg + 1), then the linear layer.
        agg = acc_ref[...] * inv_deg_ref[...]                       # (tm, F)
        y = jnp.dot(agg, w_ref[...],
                    preferred_element_type=jnp.float32) + b_ref[...]
        if apply_relu:
            y = jnp.maximum(y, 0.0)
        out_ref[...] = y.astype(out_ref.dtype)


def _sage_gcn_layer(adj_hat_bf16, x, inv_deg, w, b, *, apply_relu, tm=128, tk=128):
    """Run one tiled SAGEConv('gcn') layer.  All inputs already padded/aligned."""
    n = adj_hat_bf16.shape[0]
    f = x.shape[1]
    o = w.shape[1]
    grid = (n // tm, n // tk)

    return pl.pallas_call(
        functools.partial(_sage_gcn_kernel, apply_relu=apply_relu),
        out_shape=jax.ShapeDtypeStruct((n, o), jnp.float32),
        grid_spec=pltpu.PrefetchScalarGridSpec(
            num_scalar_prefetch=0,
            grid=grid,
            in_specs=[
                pl.BlockSpec((tm, tk), lambda i, k: (i, k)),   # adj_hat (bf16)
                pl.BlockSpec((tk, f), lambda i, k: (k, 0)),    # source features
                pl.BlockSpec((tm, 1), lambda i, k: (i, 0)),    # 1/(deg+1) per dst row
                pl.BlockSpec((f, o), lambda i, k: (0, 0)),     # weight (full-resident)
                pl.BlockSpec((1, o), lambda i, k: (0, 0)),     # bias
            ],
            out_specs=pl.BlockSpec((tm, o), lambda i, k: (i, 0)),
            scratch_shapes=[pltpu.VMEM((tm, f), jnp.float32)],
        ),
        compiler_params=pltpu.CompilerParams(
            dimension_semantics=("parallel", "arbitrary"),
            vmem_limit_bytes=48 * 1024 * 1024,
        ),
    )(adj_hat_bf16, x, inv_deg, w, b)


# ------------------------------- wrapper ------------------------------------


def _round_up(v, m):
    return ((v + m - 1) // m) * m


def graphsage_forward(adj, x, w1, b1, w2, b2, *, tm=128, tk=128):
    """GraphSAGE forward (eval mode): SAGEConv('gcn') -> ReLU -> SAGEConv('gcn').

    adj: (N, N) dense adjacency, adj[dst, src] = 1.0 for edge src->dst.
    x:   (N, in);  w1: (in, hid);  b1: (1, hid);  w2: (hid, out);  b2: (1, out).
    """
    # TODO(synk): nn.Dropout(0.5) is identity in eval mode; training-mode dropout
    # (pltpu.prng_*) is not implemented here.
    n, in_dim = x.shape
    hid = w1.shape[1]
    out = w2.shape[1]

    # Precompute once, outside the kernel: (A + I) in bf16 and 1/(in_degree + 1).
    deg = jnp.sum(adj, axis=1, keepdims=True)
    inv_deg = 1.0 / (deg + 1.0)
    adj_hat = adj + jnp.eye(n, dtype=adj.dtype)

    # Pad node count to the tile grid and feature widths to lane-dense multiples of 128.
    n_pad = _round_up(n, math.lcm(tm, tk))
    in_pad = _round_up(in_dim, 128)
    hid_pad = _round_up(hid, 128)
    out_pad = _round_up(out, 128)

    adj_hat_p = jnp.pad(adj_hat, ((0, n_pad - n), (0, n_pad - n))).astype(jnp.bfloat16)
    x_p = jnp.pad(x, ((0, n_pad - n), (0, in_pad - in_dim)))
    inv_deg_p = jnp.pad(inv_deg, ((0, n_pad - n), (0, 0)), constant_values=1.0)
    w1_p = jnp.pad(w1, ((0, in_pad - in_dim), (0, hid_pad - hid)))
    b1_p = jnp.pad(b1, ((0, 0), (0, hid_pad - hid)))
    w2_p = jnp.pad(w2, ((0, hid_pad - hid), (0, out_pad - out)))
    b2_p = jnp.pad(b2, ((0, 0), (0, out_pad - out)))

    h1 = _sage_gcn_layer(adj_hat_p, x_p, inv_deg_p, w1_p, b1_p,
                         apply_relu=True, tm=tm, tk=tk)
    h2 = _sage_gcn_layer(adj_hat_p, h1, inv_deg_p, w2_p, b2_p,
                         apply_relu=False, tm=tm, tk=tk)
    return h2[:n, :out]


# ------------------------------- reference ----------------------------------


def _reference(adj, x, w1, b1, w2, b2):
    hi = jax.lax.Precision.HIGHEST
    deg = adj.sum(axis=1, keepdims=True)
    inv = 1.0 / (deg + 1.0)
    h = (jnp.dot(adj, x, precision=hi) + x) * inv
    h = jnp.maximum(jnp.dot(h, w1, precision=hi) + b1, 0.0)
    h = (jnp.dot(adj, h, precision=hi) + h) * inv
    return jnp.dot(h, w2, precision=hi) + b2


def _xavier_uniform(key, fan_in, fan_out, shape, gain=1.0):
    bound = gain * math.sqrt(6.0 / (fan_in + fan_out))
    return jax.random.uniform(key, shape, jnp.float32, -bound, bound)


# ------------------------------- demo ---------------------------------------


if __name__ == "__main__":
    key = jax.random.PRNGKey(0)
    N, in_size, hid_size, out_size = 256, 32, 64, 16

    k_adj, k_x, k_w1, k_w2 = jax.random.split(key, 4)

    x = jax.random.normal(k_x, (N, in_size), jnp.float32)

    # Random sparse directed graph (no self loops; the 'gcn' aggregator adds the
    # self contribution itself).  adj[dst, src] = 1.0 for edge src->dst.
    adj = (jax.random.uniform(k_adj, (N, N)) < 0.05).astype(jnp.float32)
    adj = adj * (1.0 - jnp.eye(N, dtype=jnp.float32))

    # SAGEConv fc_neigh weights (xavier_uniform), separate zero bias per layer.
    # PyTorch stores weight as (out, in); passed pre-transposed as (in, out).
    w1 = _xavier_uniform(k_w1, in_size, hid_size, (in_size, hid_size))
    b1 = jnp.zeros((1, hid_size), jnp.float32)
    w2 = _xavier_uniform(k_w2, hid_size, out_size, (hid_size, out_size))
    b2 = jnp.zeros((1, out_size), jnp.float32)

    out = graphsage_forward(adj, x, w1, b1, w2, b2)
    out = jax.block_until_ready(out)

    ref = _reference(adj, x, w1, b1, w2, b2)
    assert out.shape == (N, out_size)
    assert jnp.allclose(out, ref, atol=1e-3, rtol=1e-3), "mismatch vs JAX reference"

    print("KERNEL_OK")
</pallas_src>

<mosaic_0001>
module attributes {stable_mosaic.version = 11 : i64} {
  func.func @_sage_gcn_kernel(%arg0: i32, %arg1: i32, %arg2: memref<128x128xbf16, #tpu.memory_space<vmem>>, %arg3: memref<128x128xf32, #tpu.memory_space<vmem>>, %arg4: memref<128x1xf32, #tpu.memory_space<vmem>>, %arg5: memref<128x128xf32, #tpu.memory_space<vmem>>, %arg6: memref<1x128xf32, #tpu.memory_space<vmem>>, %arg7: memref<128x128xf32, #tpu.memory_space<vmem>>, %arg8: memref<128x128xf32, #tpu.memory_space<vmem>>) attributes {dimension_semantics = [#tpu.dimension_semantics<parallel>, #tpu.dimension_semantics<arbitrary>], iteration_bounds = array<i64: 2, 2>, scalar_prefetch = 0 : i64, scratch_operands = 1 : i64, tpu.core_type = #tpu.core_type<tc>, window_params = [{transform_indices = @transform_0, window_bounds = array<i64: 128, 128>}, {transform_indices = @transform_1, window_bounds = array<i64: 128, 128>}, {transform_indices = @transform_2, window_bounds = array<i64: 128, 1>}, {pipeline_mode = #tpu.pipeline_mode<synchronous>, transform_indices = @transform_3, window_bounds = array<i64: 128, 128>}, {pipeline_mode = #tpu.pipeline_mode<synchronous>, transform_indices = @transform_4, window_bounds = array<i64: 1, 128>}, {transform_indices = @transform_5, window_bounds = array<i64: 128, 128>}]} {
    %c0_i32 = arith.constant 0 : i32
    %0 = arith.cmpi eq, %arg1, %c0_i32 : i32
    %1 = arith.extui %0 : i1 to i32
    %c0_i32_0 = arith.constant 0 : i32
    %2 = arith.cmpi ne, %1, %c0_i32_0 : i32
    scf.if %2 {
      %cst_9 = arith.constant 0.000000e+00 : f32
      %13 = vector.broadcast %cst_9 : f32 to vector<128x128xf32>
      %c0_10 = arith.constant 0 : index
      %c0_11 = arith.constant 0 : index
      %14 = vector.load %arg8[%c0_10, %c0_11] : memref<128x128xf32, #tpu.memory_space<vmem>>, vector<128x128xf32>
      tpu.vector_store %arg8[%c0_10, %c0_11], %13 {strides = array<i32>} : memref<128x128xf32, #tpu.memory_space<vmem>>, vector<128x128xf32>,
    } else {
    }
    %c0 = arith.constant 0 : index
    %c0_1 = arith.constant 0 : index
    %3 = vector.load %arg8[%c0, %c0_1] : memref<128x128xf32, #tpu.memory_space<vmem>>, vector<128x128xf32>
    %c0_2 = arith.constant 0 : index
    %c0_3 = arith.constant 0 : index
    %4 = vector.load %arg2[%c0_2, %c0_3] : memref<128x128xbf16, #tpu.memory_space<vmem>>, vector<128x128xbf16>
    %5 = arith.extf %4 : vector<128x128xbf16> to vector<128x128xf32>
    %c0_4 = arith.constant 0 : index
    %c0_5 = arith.constant 0 : index
    %6 = vector.load %arg3[%c0_4, %c0_5] : memref<128x128xf32, #tpu.memory_space<vmem>>, vector<128x128xf32>
    %cst = arith.constant dense<0.000000e+00> : vector<128x128xf32>
    %7 = tpu.matmul %5, %6, %cst {dimension_numbers = #tpu.dot_dimension_numbers<[1], [0], [0], [1], [0, 0, 1, 1], [], []>} : vector<128x128xf32>, vector<128x128xf32>, vector<128x128xf32> -> vector<128x128xf32>
    %8 = arith.addf %3, %7 : vector<128x128xf32>
    %c0_6 = arith.constant 0 : index
    %c0_7 = arith.constant 0 : index
    %9 = vector.load %arg8[%c0_6, %c0_7] : memref<128x128xf32, #tpu.memory_space<vmem>>, vector<128x128xf32>
    tpu.vector_store %arg8[%c0_6, %c0_7], %8 {strides = array<i32>} : memref<128x128xf32, #tpu.memory_space<vmem>>, vector<128x128xf32>,
    %c1_i32 = arith.constant 1 : i32
    %10 = arith.cmpi eq, %arg1, %c1_i32 : i32
    %11 = arith.extui %10 : i1 to i32
    %c0_i32_8 = arith.constant 0 : i32
    %12 = arith.cmpi ne, %11, %c0_i32_8 : i32
    scf.if %12 {
      %c0_9 = arith.constant 0 : index
      %c0_10 = arith.constant 0 : index
      %13 = vector.load %arg8[%c0_9, %c0_10] : memref<128x128xf32, #tpu.memory_space<vmem>>, vector<128x128xf32>
      %c0_11 = arith.constant 0 : index
      %c0_12 = arith.constant 0 : index
      %14 = vector.load %arg4[%c0_11, %c0_12] : memref<128x1xf32, #tpu.memory_space<vmem>>, vector<128x1xf32>
      %15 = vector.broadcast %14 : vector<128x1xf32> to vector<128x128xf32>
      %16 = arith.mulf %13, %15 : vector<128x128xf32>
      %c0_13 = arith.constant 0 : index
      %c0_14 = arith.constant 0 : index
      %17 = vector.load %arg5[%c0_13, %c0_14] : memref<128x128xf32, #tpu.memory_space<vmem>>, vector<128x128xf32>
      %cst_15 = arith.constant dense<0.000000e+00> : vector<128x128xf32>
      %18 = tpu.matmul %16, %17, %cst_15 {dimension_numbers = #tpu.dot_dimension_numbers<[1], [0], [0], [1], [0, 0, 1, 1], [], []>} : vector<128x128xf32>, vector<128x128xf32>, vector<128x128xf32> -> vector<128x128xf32>
      %c0_16 = arith.constant 0 : index
      %c0_17 = arith.constant 0 : index
      %19 = vector.load %arg6[%c0_16, %c0_17] : memref<1x128xf32, #tpu.memory_space<vmem>>, vector<1x128xf32>
      %20 = vector.broadcast %19 : vector<1x128xf32> to vector<128x128xf32>
      %21 = arith.addf %18, %20 : vector<128x128xf32>
      %cst_18 = arith.constant 0.000000e+00 : f32
      %22 = vector.broadcast %cst_18 : f32 to vector<128x128xf32>
      %23 = arith.maximumf %21, %22 : vector<128x128xf32>
      %c0_19 = arith.constant 0 : index
      %c0_20 = arith.constant 0 : index
      %24 = vector.load %arg7[%c0_19, %c0_20] : memref<128x128xf32, #tpu.memory_space<vmem>>, vector<128x128xf32>
      tpu.vector_store %arg7[%c0_19, %c0_20], %23 {strides = array<i32>} : memref<128x128xf32, #tpu.memory_space<vmem>>, vector<128x128xf32>,
    } else {
    }
    return
  }
  func.func @transform_0(%arg0: i32, %arg1: i32) -> (i32, i32) {
    %c0_i32 = arith.constant 0 : i32
    return %arg0, %arg1 : i32, i32
  }
  func.func @transform_1(%arg0: i32, %arg1: i32) -> (i32, i32) {
    %c0_i32 = arith.constant 0 : i32
    %c0_i32_0 = arith.constant 0 : i32
    return %arg1, %c0_i32 : i32, i32
  }
  func.func @transform_2(%arg0: i32, %arg1: i32) -> (i32, i32) {
    %c0_i32 = arith.constant 0 : i32
    %c0_i32_0 = arith.constant 0 : i32
    return %arg0, %c0_i32 : i32, i32
  }
  func.func @transform_3(%arg0: i32, %arg1: i32) -> (i32, i32) {
    %c0_i32 = arith.constant 0 : i32
    %c0_i32_0 = arith.constant 0 : i32
    %c0_i32_1 = arith.constant 0 : i32
    return %c0_i32, %c0_i32_0 : i32, i32
  }
  func.func @transform_4(%arg0: i32, %arg1: i32) -> (i32, i32) {
    %c0_i32 = arith.constant 0 : i32
    %c0_i32_0 = arith.constant 0 : i32
    %c0_i32_1 = arith.constant 0 : i32
    return %c0_i32, %c0_i32_0 : i32, i32
  }
  func.func @transform_5(%arg0: i32, %arg1: i32) -> (i32, i32) {
    %c0_i32 = arith.constant 0 : i32
    %c0_i32_0 = arith.constant 0 : i32
    return %arg0, %c0_i32 : i32, i32
  }
}

</mosaic_0001>

<llo_original>
// kernel: tpu_custom_call.1
$region0: #{tpu_custom_call.1}
  #allocation0 [shape = 'u32[]', space=smem, size = 0x4, offset = 0x4, fixed_abs, tag = 'smem constant byte address 0x4 - core index']
  #allocation1 [shape = 'u32[144,128]{1,0:T(1,128)}', space=vmem, size = 0x12000, scoped, tag = 'internal scratch']
  #allocation2 [shape = 'f32[128,128]{1,0:T(8,128)}', space=vmem, size = 0x10000, scoped, tag = 'scratch operand']
  %s0 = inlined_call_operand.vmem [shape: bf16[256,256], index: 0, kind: input, shape index: {}]
  %s1 = inlined_call_operand.hbm [shape: f32[256,128], index: 1, kind: input, shape index: {}]
  %s2 = inlined_call_operand.vmem [shape: f32[256,1], index: 2, kind: input, shape index: {}]
  %s3 = inlined_call_operand.hbm [shape: f32[128,128], index: 3, kind: input, shape index: {}]
  %s4 = inlined_call_operand.vmem [shape: f32[1,128], index: 4, kind: input, shape index: {}]
  %s5 = inlined_call_operand.hbm [shape: f32[256,128], index: 5, kind: output, shape index: {}]
  %s6 = sld [smem:[#allocation0]]
  $region110: #{tpu_custom_call.1} parent=0
    _
  %s8 = ssub.s32 1, %s6
  %s9 = scalar_select 0, %s8, %s6
  $region1: #{tpu_custom_call.1} parent=0
    #allocation3 [shape = 'u8[65536]{0}', space=vmem, size = 0x10000, scoped, tag = 'input window, operand 0']
    #allocation4 [shape = 'u8[131072]{0}', space=vmem, size = 0x20000, scoped, tag = 'input window, operand 1']
    #allocation5 [shape = 's32[2]{0}', space=sflag, size = 0x8, scoped, tag = 'scoped memory for tpu_custom_call.1']
    #allocation6 [shape = 's32[2]{0}', space=sflag, size = 0x8, scoped, tag = 'scoped memory for tpu_custom_call.1']
    #allocation7 [shape = 'u8[65536]{0}', space=vmem, size = 0x10000, scoped, tag = 'input window, operand 3, single buffered']
    #allocation8 [shape = 's32[1]{0}', space=sflag, size = 0x4, scoped, tag = 'scoped memory for tpu_custom_call.1']
    #allocation9 [shape = 'u8[131072]{0}', space=vmem, size = 0x20000, scoped, tag = 'output window, operand 0']
    %10 = vsyncpa [#allocation5], 0
    %s11 = scalar_lea.sflag [#allocation5], 1
    %12 = vsyncpa %s11, 0
    %13 = vsyncpa [#allocation8], 0
    %14 = vsyncpa [#allocation6], 0
    %s15 = scalar_lea.sflag [#allocation6], 1
    %16 = vsyncpa %s15, 0
    loop: start=0, step=1, limit=6
    $region2: #{tpu_custom_call.1} parent=1 // loop_pre_header
      _
    $region3: #{tpu_custom_call.1} parent=1 // loop_header
      %s18 = sphi 0, %s22
      %p19 = scmp.ge.s32.totalorder %s18, 6
      %s25 = sphi 0, %s37
      %s26 = sphi 0, %s33
      %s27 = sphi 0, %s25
      %s28 = sphi 0, %s26
      %s29 = sphi 0, %s27
      %s30 = sphi 0, %s28
      %s42 = sphi 0, %s44
      %s45 = sphi 0, %s42
      %s46 = sphi 0, %s45
      %s62 = sphi 0, %s46
      %s68 = sphi 0, %s70
      %s71 = sphi 0, %s68
      %s72 = sphi 0, %s71
      %s88 = sphi 0, %s72
      %s94 = sphi 0, %s96
      %s97 = sphi 0, %s94
      %s98 = sphi 0, %s97
      %s114 = sphi 0, %s98
      %s118 = sphi 0, %s118
      %s120 = sphi 0, %s118
      %s121 = sphi 0, %s120
      %s135 = sphi 0, %s121
      %s139 = sphi 0, %s139
      %s141 = sphi 0, %s139
      %s142 = sphi 0, %s141
      %s156 = sphi 0, %s142
      %s162 = sphi 0, %s164
      %s165 = sphi 0, %s162
      %s166 = sphi 0, %s165
      %s182 = sphi 0, %s166
    $region4: #{tpu_custom_call.1} parent=1 // loop_header_branch
      %21 = sbr.rel (%p19) target = $region8
    $region5: #{tpu_custom_call.1} parent=1 // loop_body
      %s23 = ssub.s32 %s18, 1
      %s24 = ssub.s32 %s18, 2
      %s31 = sadd.s32 1, %s26
      %p32 = scmp.ge.s32.totalorder %s31, 2
      %s33 = scalar_select %p32, 0, %s31
      %s34 = sadd.s32 1, %s25
      %s35 = scalar_select %p32, %s34, %s25
      %p36 = scmp.ge.s32.totalorder %s35, 2
      %s37 = scalar_select %p36, 0, %s35
      %s38 = ssub.s32 %s25, %s37
      %s39 = ssub.s32 %s26, %s33
      %s40 = sor.u32 %s38, %s39
      %p41 = scmp.eq.s32.totalorder %s40, 0
      %s43 = sadd.s32 %s42, 1
      %s44 = scalar_select %p41, %s42, %s43
      %p47 = pneg %p41
      %p48 = scmp.eq.s32.totalorder %s18, 3
      %p49 = por %p47, %p48
      %p50 = scmp.ne.s32.totalorder %s42, %s45
      %p51 = scmp.eq.s32.totalorder %s18, 0
      %p52 = por %p50, %p51
      %p53 = scmp.ne.s32.totalorder %s42, %s45
      %p54 = scmp.eq.s32.totalorder %s23, 3
      %p55 = por %p53, %p54
      %p56 = scmp.ne.s32.totalorder %s45, %s46
      %p57 = scmp.eq.s32.totalorder %s23, 0
      %p58 = por %p56, %p57
      %p59 = scmp.ne.s32.totalorder %s45, %s46
      %p60 = scmp.eq.s32.totalorder %s24, 3
      %p61 = por %p59, %p60
      %p63 = scmp.ne.s32.totalorder %s46, %s62
      %p64 = scmp.eq.s32.totalorder %s24, 0
      %p65 = por %p63, %p64
      %s66 = ssub.s32 %s26, %s33
      %p67 = scmp.eq.s32.totalorder %s66, 0
      %s69 = sadd.s32 %s68, 1
      %s70 = scalar_select %p67, %s68, %s69
      %p73 = pneg %p67
      %p74 = scmp.eq.s32.totalorder %s18, 3
      %p75 = por %p73, %p74
      %p76 = scmp.ne.s32.totalorder %s68, %s71
      %p77 = scmp.eq.s32.totalorder %s18, 0
      %p78 = por %p76, %p77
      %p79 = scmp.ne.s32.totalorder %s68, %s71
      %p80 = scmp.eq.s32.totalorder %s23, 3
      %p81 = por %p79, %p80
      %p82 = scmp.ne.s32.totalorder %s71, %s72
      %p83 = scmp.eq.s32.totalorder %s23, 0
      %p84 = por %p82, %p83
      %p85 = scmp.ne.s32.totalorder %s71, %s72
      %p86 = scmp.eq.s32.totalorder %s24, 3
      %p87 = por %p85, %p86
      %p89 = scmp.ne.s32.totalorder %s72, %s88
      %p90 = scmp.eq.s32.totalorder %s24, 0
      %p91 = por %p89, %p90
      %s92 = ssub.s32 %s25, %s37
      %p93 = scmp.eq.s32.totalorder %s92, 0
      %s95 = sadd.s32 %s94, 1
      %s96 = scalar_select %p93, %s94, %s95
      %p99 = pneg %p93
      %p100 = scmp.eq.s32.totalorder %s18, 3
      %p101 = por %p99, %p100
      %p102 = scmp.ne.s32.totalorder %s94, %s97
      %p103 = scmp.eq.s32.totalorder %s18, 0
      %p104 = por %p102, %p103
      %p105 = scmp.ne.s32.totalorder %s94, %s97
      %p106 = scmp.eq.s32.totalorder %s23, 3
      %p107 = por %p105, %p106
      %p108 = scmp.ne.s32.totalorder %s97, %s98
      %p109 = scmp.eq.s32.totalorder %s23, 0
      %p110 = por %p108, %p109
      %p111 = scmp.ne.s32.totalorder %s97, %s98
      %p112 = scmp.eq.s32.totalorder %s24, 3
      %p113 = por %p111, %p112
      %p115 = scmp.ne.s32.totalorder %s98, %s114
      %p116 = scmp.eq.s32.totalorder %s24, 0
      %p117 = por %p115, %p116
      %s119 = sadd.s32 %s118, 1
      %p122 = scmp.eq.s32.totalorder %s18, 3
      %p123 = scmp.ne.s32.totalorder %s118, %s120
      %p124 = scmp.eq.s32.totalorder %s18, 0
      %p125 = por %p123, %p124
      %p126 = scmp.ne.s32.totalorder %s118, %s120
      %p127 = scmp.eq.s32.totalorder %s23, 3
      %p128 = por %p126, %p127
      %p129 = scmp.ne.s32.totalorder %s120, %s121
      %p130 = scmp.eq.s32.totalorder %s23, 0
      %p131 = por %p129, %p130
      %p132 = scmp.ne.s32.totalorder %s120, %s121
      %p133 = scmp.eq.s32.totalorder %s24, 3
      %p134 = por %p132, %p133
      %p136 = scmp.ne.s32.totalorder %s121, %s135
      %p137 = scmp.eq.s32.totalorder %s24, 0
      %p138 = por %p136, %p137
      %s140 = sadd.s32 %s139, 1
      %p143 = scmp.eq.s32.totalorder %s18, 3
      %p144 = scmp.ne.s32.totalorder %s139, %s141
      %p145 = scmp.eq.s32.totalorder %s18, 0
      %p146 = por %p144, %p145
      %p147 = scmp.ne.s32.totalorder %s139, %s141
      %p148 = scmp.eq.s32.totalorder %s23, 3
      %p149 = por %p147, %p148
      %p150 = scmp.ne.s32.totalorder %s141, %s142
      %p151 = scmp.eq.s32.totalorder %s23, 0
      %p152 = por %p150, %p151
      %p153 = scmp.ne.s32.totalorder %s141, %s142
      %p154 = scmp.eq.s32.totalorder %s24, 3
      %p155 = por %p153, %p154
      %p157 = scmp.ne.s32.totalorder %s142, %s156
      %p158 = scmp.eq.s32.totalorder %s24, 0
      %p159 = por %p157, %p158
      %s160 = ssub.s32 %s25, %s37
      %p161 = scmp.eq.s32.totalorder %s160, 0
      %s163 = sadd.s32 %s162, 1
      %s164 = scalar_select %p161, %s162, %s163
      %p167 = pneg %p161
      %p168 = scmp.eq.s32.totalorder %s18, 3
      %p169 = por %p167, %p168
      %p170 = scmp.ne.s32.totalorder %s162, %s165
      %p171 = scmp.eq.s32.totalorder %s18, 0
      %p172 = por %p170, %p171
      %p173 = scmp.ne.s32.totalorder %s162, %s165
      %p174 = scmp.eq.s32.totalorder %s23, 3
      %p175 = por %p173, %p174
      %p176 = scmp.ne.s32.totalorder %s165, %s166
      %p177 = scmp.eq.s32.totalorder %s23, 0
      %p178 = por %p176, %p177
      %p179 = scmp.ne.s32.totalorder %s165, %s166
      %p180 = scmp.eq.s32.totalorder %s24, 3
      %p181 = por %p179, %p180
      %p183 = scmp.ne.s32.totalorder %s166, %s182
      %p184 = scmp.eq.s32.totalorder %s24, 0
      %p185 = por %p183, %p184
      %p186 = scmp.le.s32.totalorder 1, %s18
      %p187 = scmp.lt.s32.totalorder %s18, 5
      %p188 = pnand %p186, %p187
      %p189 = pneg %p188
      // Predicated region
      $region9: #{tpu_custom_call.1} parent=5 // pred_check
        _
      $region10: #{tpu_custom_call.1} parent=5 // pred_check_branch
        %191 = sbr.rel (%p188) target = $region12
      $region11: #{tpu_custom_call.1} parent=5 // pred_region
        %s192 = ssub.s32 %s18, 1
        // Predicated region
        $region13: #{tpu_custom_call.1} parent=11 // pred_check
          %p193 = pneg %p131
        $region14: #{tpu_custom_call.1} parent=11 // pred_check_branch
          %195 = sbr.rel (%p193) target = $region16
        $region15: #{tpu_custom_call.1} parent=11 // pred_region
          %s197 = ssub.s32 2048, 2048
          %198 = vsyncadd [#allocation8], %s197
          %s199 = sshll.u32 [#allocation7], 4
          %s200 = int_to_ptr.vmem [resolvable:$true] %s199
          %205 = dma.hbm_to_vmem [thread:$0]  %s3, 2048, %s200, [#allocation8], 128, 128, 8
        $region16: #{tpu_custom_call.1} parent=11 // pred_fallthru
          _
        // Predicated region
        $region17: #{tpu_custom_call.1} parent=11 // pred_check
          %p206 = pneg %p152
        $region18: #{tpu_custom_call.1} parent=11 // pred_check_branch
          %208 = sbr.rel (%p206) target = $region20
        $region19: #{tpu_custom_call.1} parent=11 // pred_region
          _
        $region20: #{tpu_custom_call.1} parent=11 // pred_fallthru
          _
      $region12: #{tpu_custom_call.1} parent=5 // pred_fallthru
        _
      %p209 = scmp.lt.s32.totalorder %s18, 4
      // Predicated region
      $region21: #{tpu_custom_call.1} parent=5 // pred_check
        %p210 = pneg %p209
      $region22: #{tpu_custom_call.1} parent=5 // pred_check_branch
        %212 = sbr.rel (%p210) target = $region24
      $region23: #{tpu_custom_call.1} parent=5 // pred_region
        // Predicated region
        $region25: #{tpu_custom_call.1} parent=23 // pred_check
          %p213 = pneg %p52
        $region26: #{tpu_custom_call.1} parent=23 // pred_check_branch
          %215 = sbr.rel (%p213) target = $region28
        $region27: #{tpu_custom_call.1} parent=23 // pred_region
          %s216 = sand.u32 %s42, 1
          %s217 = sand.u32 %s42, 1
          %s218 = smul.addr %s217, 64
          %s219 = scalar_lea.vmem [#allocation3], %s218
          %s220 = smul.u32 16, %s25
          %s221 = smul.addr %s220, 2
          %s222 = sadd.s32 %s26, %s221
          %s223 = smul.addr %s222, 4
          %s224 = scalar_lea.vmem %s0, %s223
          // Predicated region
          $region29: #{tpu_custom_call.1} parent=27 // pred_check
            _
          $region30: #{tpu_custom_call.1} parent=27 // pred_check_branch
            %226 = sbr.rel (0) target = $region32
          $region31: #{tpu_custom_call.1} parent=27 // pred_region
            // Predicated region
            $region33: #{tpu_custom_call.1} parent=31 // pred_check
              _
            $region34: #{tpu_custom_call.1} parent=31 // pred_check_branch
              %228 = sbr.rel target = $region36
            $region35: #{tpu_custom_call.1} parent=31 // pred_region
              // Predicated region
              $region48: #{tpu_custom_call.1} parent=35 // pred_check
                _
              $region49: #{tpu_custom_call.1} parent=35 // pred_check_branch
                %273 = sbr.rel (0) target = $region51
              $region50: #{tpu_custom_call.1} parent=35 // pred_region
                loop: start=0, step=1, limit=1
                $region52: #{tpu_custom_call.1} parent=50 // loop_pre_header
                  _
                $region53: #{tpu_custom_call.1} parent=50 // loop_header
                  %s275 = sphi 0, %s279
                  %p276 = scmp.ge.s32.totalorder %s275, 1
                  %s280 = sphi %s224, %s224
                  %s281 = sphi %s219, %s219
                $region54: #{tpu_custom_call.1} parent=50 // loop_header_branch
                  %278 = sbr.rel (%p276) target = $region58
                $region55: #{tpu_custom_call.1} parent=50 // loop_body
                  _
                $region56: #{tpu_custom_call.1} parent=50 // loop_footer
                  %s279 = sadd.s32 1, %s275
                $region57: #{tpu_custom_call.1} parent=50 // loop_footer_branch
                  %274 = sbr.rel target = $region53
                $region58: #{tpu_custom_call.1} parent=50 // loop_exit
                  _
                loop: start=0, step=1, limit=1
                $region59: #{tpu_custom_call.1} parent=50 // loop_pre_header
                  _
                $region60: #{tpu_custom_call.1} parent=50 // loop_header
                  %s284 = sphi 0, %s288
                  %p285 = scmp.ge.s32.totalorder %s284, 1
                  %s289 = sphi %s224, %s224
                  %s290 = sphi %s219, %s219
                $region61: #{tpu_custom_call.1} parent=50 // loop_header_branch
                  %287 = sbr.rel (%p285) target = $region65
                $region62: #{tpu_custom_call.1} parent=50 // loop_body
                  %v291 = vld [vmem:[%s289] sm:$0xf]
                  %292 = vst [vmem:[%s290] sm:$0xf] %v291
                  %v293 = vld [vmem:[%s289 + $0x8] sm:$0xf]
                  %294 = vst [vmem:[%s290 + $0x4] sm:$0xf] %v293
                  %v295 = vld [vmem:[%s289 + $0x10] sm:$0xf]
                  %296 = vst [vmem:[%s290 + $0x8] sm:$0xf] %v295
                  %v297 = vld [vmem:[%s289 + $0x18] sm:$0xf]
                  %298 = vst [vmem:[%s290 + $0xc] sm:$0xf] %v297
                  %v299 = vld [vmem:[%s289 + $0x20] sm:$0xf]
                  %300 = vst [vmem:[%s290 + $0x10] sm:$0xf] %v299
                  %v301 = vld [vmem:[%s289 + $0x28] sm:$0xf]
                  %302 = vst [vmem:[%s290 + $0x14] sm:$0xf] %v301
                  %v303 = vld [vmem:[%s289 + $0x30] sm:$0xf]
                  %304 = vst [vmem:[%s290 + $0x18] sm:$0xf] %v303
                  %v305 = vld [vmem:[%s289 + $0x38] sm:$0xf]
                  %306 = vst [vmem:[%s290 + $0x1c] sm:$0xf] %v305
                  %v307 = vld [vmem:[%s289 + $0x40] sm:$0xf]
                  %308 = vst [vmem:[%s290 + $0x20] sm:$0xf] %v307
                  %v309 = vld [vmem:[%s289 + $0x48] sm:$0xf]
                  %310 = vst [vmem:[%s290 + $0x24] sm:$0xf] %v309
                  %v311 = vld [vmem:[%s289 + $0x50] sm:$0xf]
                  %312 = vst [vmem:[%s290 + $0x28] sm:$0xf] %v311
                  %v313 = vld [vmem:[%s289 + $0x58] sm:$0xf]
                  %314 = vst [vmem:[%s290 + $0x2c] sm:$0xf] %v313
                  %v315 = vld [vmem:[%s289 + $0x60] sm:$0xf]
                  %316 = vst [vmem:[%s290 + $0x30] sm:$0xf] %v315
                  %v317 = vld [vmem:[%s289 + $0x68] sm:$0xf]
                  %318 = vst [vmem:[%s290 + $0x34] sm:$0xf] %v317
                  %v319 = vld [vmem:[%s289 + $0x70] sm:$0xf]
                  %320 = vst [vmem:[%s290 + $0x38] sm:$0xf] %v319
                  %v321 = vld [vmem:[%s289 + $0x78] sm:$0xf]
                  %322 = vst [vmem:[%s290 + $0x3c] sm:$0xf] %v321
                $region63: #{tpu_custom_call.1} parent=50 // loop_footer
                  %s288 = sadd.s32 1, %s284
                $region64: #{tpu_custom_call.1} parent=50 // loop_footer_branch
                  %283 = sbr.rel target = $region60
                $region65: #{tpu_custom_call.1} parent=50 // loop_exit
                  _
              $region51: #{tpu_custom_call.1} parent=35 // pred_fallthru
                _
            $region36: #{tpu_custom_call.1} parent=31 // pred_fallthru
              _
            // Predicated region
            $region37: #{tpu_custom_call.1} parent=31 // pred_check
              _
            $region38: #{tpu_custom_call.1} parent=31 // pred_check_branch
              %230 = sbr.rel (0) target = $region40
            $region39: #{tpu_custom_call.1} parent=31 // pred_region
              loop: start=0, step=1, limit=1
              $region41: #{tpu_custom_call.1} parent=39 // loop_pre_header
                _
              $region42: #{tpu_custom_call.1} parent=39 // loop_header
                %s233 = sphi 0, %s237
                %p234 = scmp.ge.s32.totalorder %s233, 1
                %s238 = sphi %s224, %s224
                %s239 = sphi %s219, %s219
              $region43: #{tpu_custom_call.1} parent=39 // loop_header_branch
                %236 = sbr.rel (%p234) target = $region47
              $region44: #{tpu_custom_call.1} parent=39 // loop_body
                %v240 = vld [vmem:[%s238] sm:$0xf]
                %241 = vst [vmem:[%s239] sm:$0xf] %v240
                %v242 = vld [vmem:[%s238 + $0x8] sm:$0xf]
                %243 = vst [vmem:[%s239 + $0x4] sm:$0xf] %v242
                %v244 = vld [vmem:[%s238 + $0x10] sm:$0xf]
                %245 = vst [vmem:[%s239 + $0x8] sm:$0xf] %v244
                %v246 = vld [vmem:[%s238 + $0x18] sm:$0xf]
                %247 = vst [vmem:[%s239 + $0xc] sm:$0xf] %v246
                %v248 = vld [vmem:[%s238 + $0x20] sm:$0xf]
                %249 = vst [vmem:[%s239 + $0x10] sm:$0xf] %v248
                %v250 = vld [vmem:[%s238 + $0x28] sm:$0xf]
                %251 = vst [vmem:[%s239 + $0x14] sm:$0xf] %v250
                %v252 = vld [vmem:[%s238 + $0x30] sm:$0xf]
                %253 = vst [vmem:[%s239 + $0x18] sm:$0xf] %v252
                %v254 = vld [vmem:[%s238 + $0x38] sm:$0xf]
                %255 = vst [vmem:[%s239 + $0x1c] sm:$0xf] %v254
                %v256 = vld [vmem:[%s238 + $0x40] sm:$0xf]
                %257 = vst [vmem:[%s239 + $0x20] sm:$0xf] %v256
                %v258 = vld [vmem:[%s238 + $0x48] sm:$0xf]
                %259 = vst [vmem:[%s239 + $0x24] sm:$0xf] %v258
                %v260 = vld [vmem:[%s238 + $0x50] sm:$0xf]
                %261 = vst [vmem:[%s239 + $0x28] sm:$0xf] %v260
                %v262 = vld [vmem:[%s238 + $0x58] sm:$0xf]
                %263 = vst [vmem:[%s239 + $0x2c] sm:$0xf] %v262
                %v264 = vld [vmem:[%s238 + $0x60] sm:$0xf]
                %265 = vst [vmem:[%s239 + $0x30] sm:$0xf] %v264
                %v266 = vld [vmem:[%s238 + $0x68] sm:$0xf]
                %267 = vst [vmem:[%s239 + $0x34] sm:$0xf] %v266
                %v268 = vld [vmem:[%s238 + $0x70] sm:$0xf]
                %269 = vst [vmem:[%s239 + $0x38] sm:$0xf] %v268
                %v270 = vld [vmem:[%s238 + $0x78] sm:$0xf]
                %271 = vst [vmem:[%s239 + $0x3c] sm:$0xf] %v270
              $region45: #{tpu_custom_call.1} parent=39 // loop_footer
                %s237 = sadd.s32 1, %s233
              $region46: #{tpu_custom_call.1} parent=39 // loop_footer_branch
                %232 = sbr.rel target = $region42
              $region47: #{tpu_custom_call.1} parent=39 // loop_exit
                _
            $region40: #{tpu_custom_call.1} parent=31 // pred_fallthru
              _
          $region32: #{tpu_custom_call.1} parent=27 // pred_fallthru
            _
          %323 = vnop
        $region28: #{tpu_custom_call.1} parent=23 // pred_fallthru
          _
        // Predicated region
        $region66: #{tpu_custom_call.1} parent=23 // pred_check
          %p324 = pneg %p78
        $region67: #{tpu_custom_call.1} parent=23 // pred_check_branch
          %326 = sbr.rel (%p324) target = $region69
        $region68: #{tpu_custom_call.1} parent=23 // pred_region
          %s327 = sand.u32 %s68, 1
          %s328 = scalar_lea.sflag [#allocation5], %s327
          %s329 = sand.u32 %s68, 1
          %s330 = smul.addr %s329, 128
          %s331 = scalar_lea.vmem [#allocation4], %s330
          %s332 = smul.u32 16, %s26
          %s334 = ssub.s32 2048, 2048
          %335 = vsyncadd %s328, %s334
          %s336 = smul.addr %s332, 128
          %s337 = scalar_lea.hbm %s1, %s336
          %s338 = sshll.u32 %s331, 4
          %s339 = int_to_ptr.vmem [resolvable:$true] %s338
          %344 = dma.hbm_to_vmem [thread:$0]  %s337, 2048, %s339, %s328, 128, 128, 8
        $region69: #{tpu_custom_call.1} parent=23 // pred_fallthru
          _
        // Predicated region
        $region70: #{tpu_custom_call.1} parent=23 // pred_check
          %p345 = pneg %p104
        $region71: #{tpu_custom_call.1} parent=23 // pred_check_branch
          %347 = sbr.rel (%p345) target = $region73
        $region72: #{tpu_custom_call.1} parent=23 // pred_region
          %s348 = smul.u32 16, %s25
          %p349 = scmp.lt.s32.totalorder %s348, 31
          %s350 = scalar_select %p349, %s348, 31
          %s351 = smul.addr %s350, 8
          %s352 = scalar_lea.vmem %s2, %s351
          %s353 = smul.u32 16, %s25
        $region73: #{tpu_custom_call.1} parent=23 // pred_fallthru
          _
      $region24: #{tpu_custom_call.1} parent=5 // pred_fallthru
        _
      %p354 = scmp.le.s32.totalorder 1, %s18
      %p355 = scmp.lt.s32.totalorder %s18, 5
      %p356 = pnand %p354, %p355
      %p357 = pneg %p356
      // Predicated region
      $region74: #{tpu_custom_call.1} parent=5 // pred_check
        _
      $region75: #{tpu_custom_call.1} parent=5 // pred_check_branch
        %359 = sbr.rel (%p356) target = $region77
      $region76: #{tpu_custom_call.1} parent=5 // pred_region
        %s360 = ssub.s32 %s18, 1
        %s361 = sand.u32 %s45, 1
        %s362 = sand.u32 %s45, 1
        %s363 = smul.addr %s362, 64
        %s364 = scalar_lea.vmem [#allocation3], %s363
        // Predicated region
        $region78: #{tpu_custom_call.1} parent=76 // pred_check
          %p365 = pneg %p58
        $region79: #{tpu_custom_call.1} parent=76 // pred_check_branch
          %367 = sbr.rel (%p365) target = $region81
        $region80: #{tpu_custom_call.1} parent=76 // pred_region
          _
        $region81: #{tpu_custom_call.1} parent=76 // pred_fallthru
          _
        %s368 = sand.u32 %s71, 1
        %s369 = scalar_lea.sflag [#allocation5], %s368
        %s370 = sand.u32 %s71, 1
        %s371 = smul.addr %s370, 128
        %s372 = scalar_lea.vmem [#allocation4], %s371
        // Predicated region
        $region82: #{tpu_custom_call.1} parent=76 // pred_check
          %p373 = pneg %p84
        $region83: #{tpu_custom_call.1} parent=76 // pred_check_branch
          %375 = sbr.rel (%p373) target = $region85
        $region84: #{tpu_custom_call.1} parent=76 // pred_region
          %376 = dma.done %s369, 2048
        $region85: #{tpu_custom_call.1} parent=76 // pred_fallthru
          _
        // Predicated region
        $region86: #{tpu_custom_call.1} parent=76 // pred_check
          %p377 = pneg %p131
        $region87: #{tpu_custom_call.1} parent=76 // pred_check_branch
          %379 = sbr.rel (%p377) target = $region89
        $region88: #{tpu_custom_call.1} parent=76 // pred_region
          %380 = dma.done [#allocation8], 2048
        $region89: #{tpu_custom_call.1} parent=76 // pred_fallthru
          _
        %s381 = sand.u32 %s45, 1
        %s382 = sand.u32 %s45, 1
        %s383 = smul.addr %s382, 64
        %s384 = scalar_lea.vmem [#allocation3], %s383
        %p385 = pneg %p58
        %p386 = pneg %p55
        %s387 = sand.u32 %s71, 1
        %s388 = scalar_lea.sflag [#allocation5], %s387
        %s389 = sand.u32 %s71, 1
        %s390 = smul.addr %s389, 128
        %s391 = scalar_lea.vmem [#allocation4], %s390
        %p392 = pneg %p84
        %p393 = pneg %p81
        %s394 = smul.u32 16, %s27
        %p395 = scmp.lt.s32.totalorder %s394, 31
        %s396 = scalar_select %p395, %s394, 31
        %s397 = smul.addr %s396, 8
        %s398 = scalar_lea.vmem %s2, %s397
        %p399 = pneg %p110
        %p400 = pneg %p107
        %p401 = pneg %p131
        %p402 = pneg %p128
        %p403 = pneg %p152
        %p404 = pneg %p149
        %p405 = pneg %p178
        %p406 = pneg %p175
        %s407 = sand.u32 %s165, 1
        %s408 = scalar_lea.sflag [#allocation6], %s407
        %s409 = sand.u32 %s165, 1
        %s410 = smul.addr %s409, 128
        %s411 = scalar_lea.vmem [#allocation9], %s410
        %s412 = smul.u32 16, %s27
        %s413 = smul.u32 16, %s28
        %s414 = smul.u32 16, %s27
        %p415 = scmp.lt.s32.totalorder %s414, 31
        %s416 = scalar_select %p415, %s414, 31
        %s417 = smul.addr %s416, 8
        %s418 = scalar_lea.vmem %s2, %s417
        %s419 = smul.u32 16, %s27
        %s420 = smul.u32 16, %s27
        %p421 = scmp.eq.s32.totalorder %s28, 0
        // Predicated region
        $region90: #{tpu_custom_call.1} parent=76 // pred_check
          %p422 = pneg %p421
        $region91: #{tpu_custom_call.1} parent=76 // pred_check_branch
          %424 = sbr.rel (%p422) target = $region93
        $region92: #{tpu_custom_call.1} parent=76 // pred_region
          %425 = vst [vmem:[#allocation2] sm:$0xff] 0.0
          %426 = vst [vmem:[#allocation2 + $0x8] sm:$0xff] 0.0
          %427 = vst [vmem:[#allocation2 + $0x10] sm:$0xff] 0.0
          %428 = vst [vmem:[#allocation2 + $0x18] sm:$0xff] 0.0
          %429 = vst [vmem:[#allocation2 + $0x20] sm:$0xff] 0.0
          %430 = vst [vmem:[#allocation2 + $0x28] sm:$0xff] 0.0
          %431 = vst [vmem:[#allocation2 + $0x30] sm:$0xff] 0.0
          %432 = vst [vmem:[#allocation2 + $0x38] sm:$0xff] 0.0
          %433 = vst [vmem:[#allocation2 + $0x40] sm:$0xff] 0.0
          %434 = vst [vmem:[#allocation2 + $0x48] sm:$0xff] 0.0
          %435 = vst [vmem:[#allocation2 + $0x50] sm:$0xff] 0.0
          %436 = vst [vmem:[#allocation2 + $0x58] sm:$0xff] 0.0
          %437 = vst [vmem:[#allocation2 + $0x60] sm:$0xff] 0.0
          %438 = vst [vmem:[#allocation2 + $0x68] sm:$0xff] 0.0
          %439 = vst [vmem:[#allocation2 + $0x70] sm:$0xff] 0.0
          %440 = vst [vmem:[#allocation2 + $0x78] sm:$0xff] 0.0
        $region93: #{tpu_custom_call.1} parent=76 // pred_fallthru
          _
        %v441 = vld [vmem:[#allocation2] sm:$0xff]
        %v442 = vld [vmem:[#allocation2 + $0x8] sm:$0xff]
        %v443 = vld [vmem:[#allocation2 + $0x10] sm:$0xff]
        %v444 = vld [vmem:[#allocation2 + $0x18] sm:$0xff]
        %v445 = vld [vmem:[#allocation2 + $0x20] sm:$0xff]
        %v446 = vld [vmem:[#allocation2 + $0x28] sm:$0xff]
        %v447 = vld [vmem:[#allocation2 + $0x30] sm:$0xff]
        %v448 = vld [vmem:[#allocation2 + $0x38] sm:$0xff]
        %v449 = vld [vmem:[#allocation2 + $0x40] sm:$0xff]
        %v450 = vld [vmem:[#allocation2 + $0x48] sm:$0xff]
        %v451 = vld [vmem:[#allocation2 + $0x50] sm:$0xff]
        %v452 = vld [vmem:[#allocation2 + $0x58] sm:$0xff]
        %v453 = vld [vmem:[#allocation2 + $0x60] sm:$0xff]
        %v454 = vld [vmem:[#allocation2 + $0x68] sm:$0xff]
        %v455 = vld [vmem:[#allocation2 + $0x70] sm:$0xff]
        %v456 = vld [vmem:[#allocation2 + $0x78] sm:$0xff]
        %v457 = vld [vmem:[%s364] sm:$0xf]
        %v458 = vld [vmem:[%s364 + $0x4] sm:$0xf]
        %v459 = vld [vmem:[%s364 + $0x8] sm:$0xf]
        %v460 = vld [vmem:[%s364 + $0xc] sm:$0xf]
        %v461 = vld [vmem:[%s364 + $0x10] sm:$0xf]
        %v462 = vld [vmem:[%s364 + $0x14] sm:$0xf]
        %v463 = vld [vmem:[%s364 + $0x18] sm:$0xf]
        %v464 = vld [vmem:[%s364 + $0x1c] sm:$0xf]
        %v465 = vld [vmem:[%s364 + $0x20] sm:$0xf]
        %v466 = vld [vmem:[%s364 + $0x24] sm:$0xf]
        %v467 = vld [vmem:[%s364 + $0x28] sm:$0xf]
        %v468 = vld [vmem:[%s364 + $0x2c] sm:$0xf]
        %v469 = vld [vmem:[%s364 + $0x30] sm:$0xf]
        %v470 = vld [vmem:[%s364 + $0x34] sm:$0xf]
        %v471 = vld [vmem:[%s364 + $0x38] sm:$0xf]
        %v472 = vld [vmem:[%s364 + $0x3c] sm:$0xf]
        %v473 = vunpack.c.l.bf16 %v457
        %v474 = vunpack.c.l.bf16 %v458
        %v475 = vunpack.c.l.bf16 %v459
        %v476 = vunpack.c.l.bf16 %v460
        %v477 = vunpack.c.l.bf16 %v461
        %v478 = vunpack.c.l.bf16 %v462
        %v479 = vunpack.c.l.bf16 %v463
        %v480 = vunpack.c.l.bf16 %v464
        %v481 = vunpack.c.l.bf16 %v465
        %v482 = vunpack.c.l.bf16 %v466
        %v483 = vunpack.c.l.bf16 %v467
        %v484 = vunpack.c.l.bf16 %v468
        %v485 = vunpack.c.l.bf16 %v469
        %v486 = vunpack.c.l.bf16 %v470
        %v487 = vunpack.c.l.bf16 %v471
        %v488 = vunpack.c.l.bf16 %v472
        %v489 = vld [vmem:[%s372] sm:$0xff]
        %v490 = vld [vmem:[%s372 + $0x8] sm:$0xff]
        %v491 = vld [vmem:[%s372 + $0x10] sm:$0xff]
        %v492 = vld [vmem:[%s372 + $0x18] sm:$0xff]
        %v493 = vld [vmem:[%s372 + $0x20] sm:$0xff]
        %v494 = vld [vmem:[%s372 + $0x28] sm:$0xff]
        %v495 = vld [vmem:[%s372 + $0x30] sm:$0xff]
        %v496 = vld [vmem:[%s372 + $0x38] sm:$0xff]
        %v497 = vld [vmem:[%s372 + $0x40] sm:$0xff]
        %v498 = vld [vmem:[%s372 + $0x48] sm:$0xff]
        %v499 = vld [vmem:[%s372 + $0x50] sm:$0xff]
        %v500 = vld [vmem:[%s372 + $0x58] sm:$0xff]
        %v501 = vld [vmem:[%s372 + $0x60] sm:$0xff]
        %v502 = vld [vmem:[%s372 + $0x68] sm:$0xff]
        %v503 = vld [vmem:[%s372 + $0x70] sm:$0xff]
        %v504 = vld [vmem:[%s372 + $0x78] sm:$0xff]
        %505 = vmatprep.subr.mxu0 0.0
        %506 = vmatpush1.msra.mxu0 %v489
        %507 = vmatprep.subr.mxu0 0.0
        %508 = vmatpush1.msra.mxu0 %v490
        %509 = vmatprep.subr.mxu0 0.0
        %510 = vmatpush1.msra.mxu0 %v491
        %511 = vmatprep.subr.mxu0 0.0
        %512 = vmatpush1.msra.mxu0 %v492
        %513 = vmatprep.subr.mxu0 0.0
        %514 = vmatpush1.msra.mxu0 %v493
        %515 = vmatprep.subr.mxu0 0.0
        %516 = vmatpush1.msra.mxu0 %v494
        %517 = vmatprep.subr.mxu0 0.0
        %518 = vmatpush1.msra.mxu0 %v495
        %519 = vmatprep.subr.mxu0 0.0
        %520 = vmatpush1.msra.mxu0 %v496
        %521 = vmatprep.subr.mxu0 0.0
        %522 = vmatpush1.msra.mxu0 %v497
        %523 = vmatprep.subr.mxu0 0.0
        %524 = vmatpush1.msra.mxu0 %v498
        %525 = vmatprep.subr.mxu0 0.0
        %526 = vmatpush1.msra.mxu0 %v499
        %527 = vmatprep.subr.mxu0 0.0
        %528 = vmatpush1.msra.mxu0 %v500
        %529 = vmatprep.subr.mxu0 0.0
        %530 = vmatpush1.msra.mxu0 %v501
        %531 = vmatprep.subr.mxu0 0.0
        %532 = vmatpush1.msra.mxu0 %v502
        %533 = vmatprep.subr.mxu0 0.0
        %534 = vmatpush1.msra.mxu0 %v503
        %535 = vmatprep.subr.mxu0 0.0
        %536 = vmatpush1.msra.mxu0 %v504
        %537 = vmatprep.subr.mxu0 0.0
        %538 = vmatpush1.msra.mxu0 0.0
        %539 = vmatprep.subr.mxu0 0.0
        %540 = vmatpush1.msra.mxu0 0.0
        %541 = vmatprep.subr.mxu0 0.0
        %542 = vmatpush1.msra.mxu0 0.0
        %543 = vmatprep.subr.mxu0 0.0
        %544 = vmatpush1.msra.mxu0 0.0
        %545 = vmatprep.subr.mxu0 0.0
        %546 = vmatpush1.msra.mxu0 0.0
        %547 = vmatprep.subr.mxu0 0.0
        %548 = vmatpush1.msra.mxu0 0.0
        %549 = vmatprep.subr.mxu0 0.0
        %550 = vmatpush1.msra.mxu0 0.0
        %551 = vmatprep.subr.mxu0 0.0
        %552 = vmatpush1.msra.mxu0 0.0
        %553 = vmatprep.subr.mxu0 0.0
        %554 = vmatpush1.msra.mxu0 0.0
        %555 = vmatprep.subr.mxu0 0.0
        %556 = vmatpush1.msra.mxu0 0.0
        %557 = vmatprep.subr.mxu0 0.0
        %558 = vmatpush1.msra.mxu0 0.0
        %559 = vmatprep.subr.mxu0 0.0
        %560 = vmatpush1.msra.mxu0 0.0
        %561 = vmatprep.subr.mxu0 0.0
        %562 = vmatpush1.msra.mxu0 0.0
        %563 = vmatprep.subr.mxu0 0.0
        %564 = vmatpush1.msra.mxu0 0.0
        %565 = vmatprep.subr.mxu0 0.0
        %566 = vmatpush1.msra.mxu0 0.0
        %567 = vmatprep.subr.mxu0 0.0
        %568 = vmatpush1.msra.mxu0 0.0
        %569 = vmatprep.mubr.f32.mxu0 0.0
        %570 = vmatmul.mubr.f32.gmra.mrb[0].mxu0 %v473
        %v571 = vpop.f32.mrb[0].mxu0
        %v572 = vadd.f32 0.0, %v571
        %v573 = vpop.f32.mrb[0].mxu0
        %574 = vmatprep.mubr.f32.mxu0 0.0
        %575 = vmatmul.mubr.f32.gmra.mrb[0].mxu0 %v474
        %v576 = vpop.f32.mrb[0].mxu0
        %v577 = vadd.f32 0.0, %v576
        %v578 = vpop.f32.mrb[0].mxu0
        %579 = vmatprep.mubr.f32.mxu0 0.0
        %580 = vmatmul.mubr.f32.gmra.mrb[0].mxu0 %v475
        %v581 = vpop.f32.mrb[0].mxu0
        %v582 = vadd.f32 0.0, %v581
        %v583 = vpop.f32.mrb[0].mxu0
        %584 = vmatprep.mubr.f32.mxu0 0.0
        %585 = vmatmul.mubr.f32.gmra.mrb[0].mxu0 %v476
        %v586 = vpop.f32.mrb[0].mxu0
        %v587 = vadd.f32 0.0, %v586
        %v588 = vpop.f32.mrb[0].mxu0
        %589 = vmatprep.mubr.f32.mxu0 0.0
        %590 = vmatmul.mubr.f32.gmra.mrb[0].mxu0 %v477
        %v591 = vpop.f32.mrb[0].mxu0
        %v592 = vadd.f32 0.0, %v591
        %v593 = vpop.f32.mrb[0].mxu0
        %594 = vmatprep.mubr.f32.mxu0 0.0
        %595 = vmatmul.mubr.f32.gmra.mrb[0].mxu0 %v478
        %v596 = vpop.f32.mrb[0].mxu0
        %v597 = vadd.f32 0.0, %v596
        %v598 = vpop.f32.mrb[0].mxu0
        %599 = vmatprep.mubr.f32.mxu0 0.0
        %600 = vmatmul.mubr.f32.gmra.mrb[0].mxu0 %v479
        %v601 = vpop.f32.mrb[0].mxu0
        %v602 = vadd.f32 0.0, %v601
        %v603 = vpop.f32.mrb[0].mxu0
        %604 = vmatprep.mubr.f32.mxu0 0.0
        %605 = vmatmul.mubr.f32.gmra.mrb[0].mxu0 %v480
        %v606 = vpop.f32.mrb[0].mxu0
        %v607 = vadd.f32 0.0, %v606
        %v608 = vpop.f32.mrb[0].mxu0
        %609 = vmatprep.mubr.f32.mxu0 0.0
        %610 = vmatmul.mubr.f32.gmra.mrb[0].mxu0 %v481
        %v611 = vpop.f32.mrb[0].mxu0
        %v612 = vadd.f32 0.0, %v611
        %v613 = vpop.f32.mrb[0].mxu0
        %614 = vmatprep.mubr.f32.mxu0 0.0
        %615 = vmatmul.mubr.f32.gmra.mrb[0].mxu0 %v482
        %v616 = vpop.f32.mrb[0].mxu0
        %v617 = vadd.f32 0.0, %v616
        %v618 = vpop.f32.mrb[0].mxu0
        %619 = vmatprep.mubr.f32.mxu0 0.0
        %620 = vmatmul.mubr.f32.gmra.mrb[0].mxu0 %v483
        %v621 = vpop.f32.mrb[0].mxu0
        %v622 = vadd.f32 0.0, %v621
        %v623 = vpop.f32.mrb[0].mxu0
        %624 = vmatprep.mubr.f32.mxu0 0.0
        %625 = vmatmul.mubr.f32.gmra.mrb[0].mxu0 %v484
        %v626 = vpop.f32.mrb[0].mxu0
        %v627 = vadd.f32 0.0, %v626
        %v628 = vpop.f32.mrb[0].mxu0
        %629 = vmatprep.mubr.f32.mxu0 0.0
        %630 = vmatmul.mubr.f32.gmra.mrb[0].mxu0 %v485
        %v631 = vpop.f32.mrb[0].mxu0
        %v632 = vadd.f32 0.0, %v631
        %v633 = vpop.f32.mrb[0].mxu0
        %634 = vmatprep.mubr.f32.mxu0 0.0
        %635 = vmatmul.mubr.f32.gmra.mrb[0].mxu0 %v486
        %v636 = vpop.f32.mrb[0].mxu0
        %v637 = vadd.f32 0.0, %v636
        %v638 = vpop.f32.mrb[0].mxu0
        %639 = vmatprep.mubr.f32.mxu0 0.0
        %640 = vmatmul.mubr.f32.gmra.mrb[0].mxu0 %v487
        %v641 = vpop.f32.mrb[0].mxu0
        %v642 = vadd.f32 0.0, %v641
        %v643 = vpop.f32.mrb[0].mxu0
        %644 = vmatprep.mubr.f32.mxu0 0.0
        %645 = vmatmul.mubr.f32.gmra.mrb[0].mxu0 %v488
        %v646 = vpop.f32.mrb[0].mxu0
        %v647 = vadd.f32 0.0, %v646
        %v648 = vpop.f32.mrb[0].mxu0
        %649 = vdwg.mxu0
        %v650 = vadd.f32 %v441, %v572
        %v651 = vadd.f32 %v442, %v577
        %v652 = vadd.f32 %v443, %v582
        %v653 = vadd.f32 %v444, %v587
        %v654 = vadd.f32 %v445, %v592
        %v655 = vadd.f32 %v446, %v597
        %v656 = vadd.f32 %v447, %v602
        %v657 = vadd.f32 %v448, %v607
        %v658 = vadd.f32 %v449, %v612
        %v659 = vadd.f32 %v450, %v617
        %v660 = vadd.f32 %v451, %v622
        %v661 = vadd.f32 %v452, %v627
        %v662 = vadd.f32 %v453, %v632
        %v663 = vadd.f32 %v454, %v637
        %v664 = vadd.f32 %v455, %v642
        %v665 = vadd.f32 %v456, %v647
        %666 = vst [vmem:[#allocation2] sm:$0xff] %v650
        %667 = vst [vmem:[#allocation2 + $0x8] sm:$0xff] %v651
        %668 = vst [vmem:[#allocation2 + $0x10] sm:$0xff] %v652
        %669 = vst [vmem:[#allocation2 + $0x18] sm:$0xff] %v653
        %670 = vst [vmem:[#allocation2 + $0x20] sm:$0xff] %v654
        %671 = vst [vmem:[#allocation2 + $0x28] sm:$0xff] %v655
        %672 = vst [vmem:[#allocation2 + $0x30] sm:$0xff] %v656
        %673 = vst [vmem:[#allocation2 + $0x38] sm:$0xff] %v657
        %674 = vst [vmem:[#allocation2 + $0x40] sm:$0xff] %v658
        %675 = vst [vmem:[#allocation2 + $0x48] sm:$0xff] %v659
        %676 = vst [vmem:[#allocation2 + $0x50] sm:$0xff] %v660
        %677 = vst [vmem:[#allocation2 + $0x58] sm:$0xff] %v661
        %678 = vst [vmem:[#allocation2 + $0x60] sm:$0xff] %v662
        %679 = vst [vmem:[#allocation2 + $0x68] sm:$0xff] %v663
        %680 = vst [vmem:[#allocation2 + $0x70] sm:$0xff] %v664
        %681 = vst [vmem:[#allocation2 + $0x78] sm:$0xff] %v665
        %p682 = scmp.eq.s32.totalorder %s28, 1
        // Predicated region
        $region94: #{tpu_custom_call.1} parent=76 // pred_check
          %p683 = pneg %p682
        $region95: #{tpu_custom_call.1} parent=76 // pred_check_branch
          %685 = sbr.rel (%p683) target = $region97
        $region96: #{tpu_custom_call.1} parent=76 // pred_region
          %v686 = vld [vmem:[#allocation2] sm:$0xff]
          %v687 = vld [vmem:[#allocation2 + $0x8] sm:$0xff]
          %v688 = vld [vmem:[#allocation2 + $0x10] sm:$0xff]
          %v689 = vld [vmem:[#allocation2 + $0x18] sm:$0xff]
          %v690 = vld [vmem:[#allocation2 + $0x20] sm:$0xff]
          %v691 = vld [vmem:[#allocation2 + $0x28] sm:$0xff]
          %v692 = vld [vmem:[#allocation2 + $0x30] sm:$0xff]
          %v693 = vld [vmem:[#allocation2 + $0x38] sm:$0xff]
          %v694 = vld [vmem:[#allocation2 + $0x40] sm:$0xff]
          %v695 = vld [vmem:[#allocation2 + $0x48] sm:$0xff]
          %v696 = vld [vmem:[#allocation2 + $0x50] sm:$0xff]
          %v697 = vld [vmem:[#allocation2 + $0x58] sm:$0xff]
          %v698 = vld [vmem:[#allocation2 + $0x60] sm:$0xff]
          %v699 = vld [vmem:[#allocation2 + $0x68] sm:$0xff]
          %v700 = vld [vmem:[#allocation2 + $0x70] sm:$0xff]
          %v701 = vld [vmem:[#allocation2 + $0x78] sm:$0xff]
          %v702 = vld [vmem:[%s418] sm:$0xff]
          %v703 = vld [vmem:[%s418 + $0x8] sm:$0xff]
          %v704 = vld [vmem:[%s418 + $0x10] sm:$0xff]
          %v705 = vld [vmem:[%s418 + $0x18] sm:$0xff]
          %v706 = vld [vmem:[%s418 + $0x20] sm:$0xff]
          %v707 = vld [vmem:[%s418 + $0x28] sm:$0xff]
          %v708 = vld [vmem:[%s418 + $0x30] sm:$0xff]
          %v709 = vld [vmem:[%s418 + $0x38] sm:$0xff]
          %v710 = vld [vmem:[%s418 + $0x40] sm:$0xff]
          %v711 = vld [vmem:[%s418 + $0x48] sm:$0xff]
          %v712 = vld [vmem:[%s418 + $0x50] sm:$0xff]
          %v713 = vld [vmem:[%s418 + $0x58] sm:$0xff]
          %v714 = vld [vmem:[%s418 + $0x60] sm:$0xff]
          %v715 = vld [vmem:[%s418 + $0x68] sm:$0xff]
          %v716 = vld [vmem:[%s418 + $0x70] sm:$0xff]
          %v717 = vld [vmem:[%s418 + $0x78] sm:$0xff]
          %719 = vset.pattern.permute.xlu0 0
          %720 = vperm.xlu0 %719, %v702
          %v721 = vpop.permute.xlu0 %720
          %724 = vset.pattern.permute.xlu0 0
          %725 = vperm.xlu0 %724, %v703
          %v726 = vpop.permute.xlu0 %725
          %729 = vset.pattern.permute.xlu0 0
          %730 = vperm.xlu0 %729, %v704
          %v731 = vpop.permute.xlu0 %730
          %734 = vset.pattern.permute.xlu0 0
          %735 = vperm.xlu0 %734, %v705
          %v736 = vpop.permute.xlu0 %735
          %739 = vset.pattern.permute.xlu0 0
          %740 = vperm.xlu0 %739, %v706
          %v741 = vpop.permute.xlu0 %740
          %744 = vset.pattern.permute.xlu0 0
          %745 = vperm.xlu0 %744, %v707
          %v746 = vpop.permute.xlu0 %745
          %749 = vset.pattern.permute.xlu0 0
          %750 = vperm.xlu0 %749, %v708
          %v751 = vpop.permute.xlu0 %750
          %754 = vset.pattern.permute.xlu0 0
          %755 = vperm.xlu0 %754, %v709
          %v756 = vpop.permute.xlu0 %755
          %759 = vset.pattern.permute.xlu0 0
          %760 = vperm.xlu0 %759, %v710
          %v761 = vpop.permute.xlu0 %760
          %764 = vset.pattern.permute.xlu0 0
          %765 = vperm.xlu0 %764, %v711
          %v766 = vpop.permute.xlu0 %765
          %769 = vset.pattern.permute.xlu0 0
          %770 = vperm.xlu0 %769, %v712
          %v771 = vpop.permute.xlu0 %770
          %774 = vset.pattern.permute.xlu0 0
          %775 = vperm.xlu0 %774, %v713
          %v776 = vpop.permute.xlu0 %775
          %779 = vset.pattern.permute.xlu0 0
          %780 = vperm.xlu0 %779, %v714
          %v781 = vpop.permute.xlu0 %780
          %784 = vset.pattern.permute.xlu0 0
          %785 = vperm.xlu0 %784, %v715
          %v786 = vpop.permute.xlu0 %785
          %789 = vset.pattern.permute.xlu0 0
          %790 = vperm.xlu0 %789, %v716
          %v791 = vpop.permute.xlu0 %790
          %794 = vset.pattern.permute.xlu0 0
          %795 = vperm.xlu0 %794, %v717
          %v796 = vpop.permute.xlu0 %795
          %v798 = vmul.f32 %v686, %v721
          %v799 = vmul.f32 %v687, %v726
          %v800 = vmul.f32 %v688, %v731
          %v801 = vmul.f32 %v689, %v736
          %v802 = vmul.f32 %v690, %v741
          %v803 = vmul.f32 %v691, %v746
          %v804 = vmul.f32 %v692, %v751
          %v805 = vmul.f32 %v693, %v756
          %v806 = vmul.f32 %v694, %v761
          %v807 = vmul.f32 %v695, %v766
          %v808 = vmul.f32 %v696, %v771
          %v809 = vmul.f32 %v697, %v776
          %v810 = vmul.f32 %v698, %v781
          %v811 = vmul.f32 %v699, %v786
          %v812 = vmul.f32 %v700, %v791
          %v813 = vmul.f32 %v701, %v796
          %v814 = vld [vmem:[#allocation7] sm:$0xff]
          %v815 = vld [vmem:[#allocation7 + $0x8] sm:$0xff]
          %v816 = vld [vmem:[#allocation7 + $0x10] sm:$0xff]
          %v817 = vld [vmem:[#allocation7 + $0x18] sm:$0xff]
          %v818 = vld [vmem:[#allocation7 + $0x20] sm:$0xff]
          %v819 = vld [vmem:[#allocation7 + $0x28] sm:$0xff]
          %v820 = vld [vmem:[#allocation7 + $0x30] sm:$0xff]
          %v821 = vld [vmem:[#allocation7 + $0x38] sm:$0xff]
          %v822 = vld [vmem:[#allocation7 + $0x40] sm:$0xff]
          %v823 = vld [vmem:[#allocation7 + $0x48] sm:$0xff]
          %v824 = vld [vmem:[#allocation7 + $0x50] sm:$0xff]
          %v825 = vld [vmem:[#allocation7 + $0x58] sm:$0xff]
          %v826 = vld [vmem:[#allocation7 + $0x60] sm:$0xff]
          %v827 = vld [vmem:[#allocation7 + $0x68] sm:$0xff]
          %v828 = vld [vmem:[#allocation7 + $0x70] sm:$0xff]
          %v829 = vld [vmem:[#allocation7 + $0x78] sm:$0xff]
          %v830 = vld [vmem:[%s4] sm:$0x1]
          %v832 = vlaneseq
          %v833 = vshrl.u32 %v832, 7
          %v834 = vsub.s32 0, %v833
          %v835 = vrot.slane %v830, %v834
          %837 = vmatprep.subr.mxu0 0.0
          %838 = vmatpush1.msra.mxu0 %v814
          %839 = vmatprep.subr.mxu0 0.0
          %840 = vmatpush1.msra.mxu0 %v815
          %841 = vmatprep.subr.mxu0 0.0
          %842 = vmatpush1.msra.mxu0 %v816
          %843 = vmatprep.subr.mxu0 0.0
          %844 = vmatpush1.msra.mxu0 %v817
          %845 = vmatprep.subr.mxu0 0.0
          %846 = vmatpush1.msra.mxu0 %v818
          %847 = vmatprep.subr.mxu0 0.0
          %848 = vmatpush1.msra.mxu0 %v819
          %849 = vmatprep.subr.mxu0 0.0
          %850 = vmatpush1.msra.mxu0 %v820
          %851 = vmatprep.subr.mxu0 0.0
          %852 = vmatpush1.msra.mxu0 %v821
          %853 = vmatprep.subr.mxu0 0.0
          %854 = vmatpush1.msra.mxu0 %v822
          %855 = vmatprep.subr.mxu0 0.0
          %856 = vmatpush1.msra.mxu0 %v823
          %857 = vmatprep.subr.mxu0 0.0
          %858 = vmatpush1.msra.mxu0 %v824
          %859 = vmatprep.subr.mxu0 0.0
          %860 = vmatpush1.msra.mxu0 %v825
          %861 = vmatprep.subr.mxu0 0.0
          %862 = vmatpush1.msra.mxu0 %v826
          %863 = vmatprep.subr.mxu0 0.0
          %864 = vmatpush1.msra.mxu0 %v827
          %865 = vmatprep.subr.mxu0 0.0
          %866 = vmatpush1.msra.mxu0 %v828
          %867 = vmatprep.subr.mxu0 0.0
          %868 = vmatpush1.msra.mxu0 %v829
          %869 = vmatprep.subr.mxu0 0.0
          %870 = vmatpush1.msra.mxu0 0.0
          %871 = vmatprep.subr.mxu0 0.0
          %872 = vmatpush1.msra.mxu0 0.0
          %873 = vmatprep.subr.mxu0 0.0
          %874 = vmatpush1.msra.mxu0 0.0
          %875 = vmatprep.subr.mxu0 0.0
          %876 = vmatpush1.msra.mxu0 0.0
          %877 = vmatprep.subr.mxu0 0.0
          %878 = vmatpush1.msra.mxu0 0.0
          %879 = vmatprep.subr.mxu0 0.0
          %880 = vmatpush1.msra.mxu0 0.0
          %881 = vmatprep.subr.mxu0 0.0
          %882 = vmatpush1.msra.mxu0 0.0
          %883 = vmatprep.subr.mxu0 0.0
          %884 = vmatpush1.msra.mxu0 0.0
          %885 = vmatprep.subr.mxu0 0.0
          %886 = vmatpush1.msra.mxu0 0.0
          %887 = vmatprep.subr.mxu0 0.0
          %888 = vmatpush1.msra.mxu0 0.0
          %889 = vmatprep.subr.mxu0 0.0
          %890 = vmatpush1.msra.mxu0 0.0
          %891 = vmatprep.subr.mxu0 0.0
          %892 = vmatpush1.msra.mxu0 0.0
          %893 = vmatprep.subr.mxu0 0.0
          %894 = vmatpush1.msra.mxu0 0.0
          %895 = vmatprep.subr.mxu0 0.0
          %896 = vmatpush1.msra.mxu0 0.0
          %897 = vmatprep.subr.mxu0 0.0
          %898 = vmatpush1.msra.mxu0 0.0
          %899 = vmatprep.subr.mxu0 0.0
          %900 = vmatpush1.msra.mxu0 0.0
          %901 = vmatprep.mubr.f32.mxu0 0.0
          %902 = vmatmul.mubr.f32.gmra.mrb[0].mxu0 %v798
          %v903 = vpop.f32.mrb[0].mxu0
          %v904 = vadd.f32 %v835, %v903
          %v905 = vpop.f32.mrb[0].mxu0
          %906 = vmatprep.mubr.f32.mxu0 0.0
          %907 = vmatmul.mubr.f32.gmra.mrb[0].mxu0 %v799
          %v908 = vpop.f32.mrb[0].mxu0
          %v909 = vadd.f32 %v835, %v908
          %v910 = vpop.f32.mrb[0].mxu0
          %911 = vmatprep.mubr.f32.mxu0 0.0
          %912 = vmatmul.mubr.f32.gmra.mrb[0].mxu0 %v800
          %v913 = vpop.f32.mrb[0].mxu0
          %v914 = vadd.f32 %v835, %v913
          %v915 = vpop.f32.mrb[0].mxu0
          %916 = vmatprep.mubr.f32.mxu0 0.0
          %917 = vmatmul.mubr.f32.gmra.mrb[0].mxu0 %v801
          %v918 = vpop.f32.mrb[0].mxu0
          %v919 = vadd.f32 %v835, %v918
          %v920 = vpop.f32.mrb[0].mxu0
          %921 = vmatprep.mubr.f32.mxu0 0.0
          %922 = vmatmul.mubr.f32.gmra.mrb[0].mxu0 %v802
          %v923 = vpop.f32.mrb[0].mxu0
          %v924 = vadd.f32 %v835, %v923
          %v925 = vpop.f32.mrb[0].mxu0
          %926 = vmatprep.mubr.f32.mxu0 0.0
          %927 = vmatmul.mubr.f32.gmra.mrb[0].mxu0 %v803
          %v928 = vpop.f32.mrb[0].mxu0
          %v929 = vadd.f32 %v835, %v928
          %v930 = vpop.f32.mrb[0].mxu0
          %931 = vmatprep.mubr.f32.mxu0 0.0
          %932 = vmatmul.mubr.f32.gmra.mrb[0].mxu0 %v804
          %v933 = vpop.f32.mrb[0].mxu0
          %v934 = vadd.f32 %v835, %v933
          %v935 = vpop.f32.mrb[0].mxu0
          %936 = vmatprep.mubr.f32.mxu0 0.0
          %937 = vmatmul.mubr.f32.gmra.mrb[0].mxu0 %v805
          %v938 = vpop.f32.mrb[0].mxu0
          %v939 = vadd.f32 %v835, %v938
          %v940 = vpop.f32.mrb[0].mxu0
          %941 = vmatprep.mubr.f32.mxu0 0.0
          %942 = vmatmul.mubr.f32.gmra.mrb[0].mxu0 %v806
          %v943 = vpop.f32.mrb[0].mxu0
          %v944 = vadd.f32 %v835, %v943
          %v945 = vpop.f32.mrb[0].mxu0
          %946 = vmatprep.mubr.f32.mxu0 0.0
          %947 = vmatmul.mubr.f32.gmra.mrb[0].mxu0 %v807
          %v948 = vpop.f32.mrb[0].mxu0
          %v949 = vadd.f32 %v835, %v948
          %v950 = vpop.f32.mrb[0].mxu0
          %951 = vmatprep.mubr.f32.mxu0 0.0
          %952 = vmatmul.mubr.f32.gmra.mrb[0].mxu0 %v808
          %v953 = vpop.f32.mrb[0].mxu0
          %v954 = vadd.f32 %v835, %v953
          %v955 = vpop.f32.mrb[0].mxu0
          %956 = vmatprep.mubr.f32.mxu0 0.0
          %957 = vmatmul.mubr.f32.gmra.mrb[0].mxu0 %v809
          %v958 = vpop.f32.mrb[0].mxu0
          %v959 = vadd.f32 %v835, %v958
          %v960 = vpop.f32.mrb[0].mxu0
          %961 = vmatprep.mubr.f32.mxu0 0.0
          %962 = vmatmul.mubr.f32.gmra.mrb[0].mxu0 %v810
          %v963 = vpop.f32.mrb[0].mxu0
          %v964 = vadd.f32 %v835, %v963
          %v965 = vpop.f32.mrb[0].mxu0
          %966 = vmatprep.mubr.f32.mxu0 0.0
          %967 = vmatmul.mubr.f32.gmra.mrb[0].mxu0 %v811
          %v968 = vpop.f32.mrb[0].mxu0
          %v969 = vadd.f32 %v835, %v968
          %v970 = vpop.f32.mrb[0].mxu0
          %971 = vmatprep.mubr.f32.mxu0 0.0
          %972 = vmatmul.mubr.f32.gmra.mrb[0].mxu0 %v812
          %v973 = vpop.f32.mrb[0].mxu0
          %v974 = vadd.f32 %v835, %v973
          %v975 = vpop.f32.mrb[0].mxu0
          %976 = vmatprep.mubr.f32.mxu0 0.0
          %977 = vmatmul.mubr.f32.gmra.mrb[0].mxu0 %v813
          %v978 = vpop.f32.mrb[0].mxu0
          %v979 = vadd.f32 %v835, %v978
          %v980 = vpop.f32.mrb[0].mxu0
          %981 = vdwg.mxu0
          %v982 = vmax.f32 %v904, 0.0
          %v983 = vmax.f32 %v909, 0.0
          %v984 = vmax.f32 %v914, 0.0
          %v985 = vmax.f32 %v919, 0.0
          %v986 = vmax.f32 %v924, 0.0
          %v987 = vmax.f32 %v929, 0.0
          %v988 = vmax.f32 %v934, 0.0
          %v989 = vmax.f32 %v939, 0.0
          %v990 = vmax.f32 %v944, 0.0
          %v991 = vmax.f32 %v949, 0.0
          %v992 = vmax.f32 %v954, 0.0
          %v993 = vmax.f32 %v959, 0.0
          %v994 = vmax.f32 %v964, 0.0
          %v995 = vmax.f32 %v969, 0.0
          %v996 = vmax.f32 %v974, 0.0
          %v997 = vmax.f32 %v979, 0.0
          %998 = vst [vmem:[%s411] sm:$0xff] %v982
          %999 = vst [vmem:[%s411 + $0x8] sm:$0xff] %v983
          %1000 = vst [vmem:[%s411 + $0x10] sm:$0xff] %v984
          %1001 = vst [vmem:[%s411 + $0x18] sm:$0xff] %v985
          %1002 = vst [vmem:[%s411 + $0x20] sm:$0xff] %v986
          %1003 = vst [vmem:[%s411 + $0x28] sm:$0xff] %v987
          %1004 = vst [vmem:[%s411 + $0x30] sm:$0xff] %v988
          %1005 = vst [vmem:[%s411 + $0x38] sm:$0xff] %v989
          %1006 = vst [vmem:[%s411 + $0x40] sm:$0xff] %v990
          %1007 = vst [vmem:[%s411 + $0x48] sm:$0xff] %v991
          %1008 = vst [vmem:[%s411 + $0x50] sm:$0xff] %v992
          %1009 = vst [vmem:[%s411 + $0x58] sm:$0xff] %v993
          %1010 = vst [vmem:[%s411 + $0x60] sm:$0xff] %v994
          %1011 = vst [vmem:[%s411 + $0x68] sm:$0xff] %v995
          %1012 = vst [vmem:[%s411 + $0x70] sm:$0xff] %v996
          %1013 = vst [vmem:[%s411 + $0x78] sm:$0xff] %v997
        $region97: #{tpu_custom_call.1} parent=76 // pred_fallthru
          _
        %s1014 = sand.u32 %s165, 1
        %s1015 = scalar_lea.sflag [#allocation6], %s1014
        %s1016 = sand.u32 %s165, 1
        %s1017 = smul.addr %s1016, 128
        %s1018 = scalar_lea.vmem [#allocation9], %s1017
        // Predicated region
        $region98: #{tpu_custom_call.1} parent=76 // pred_check
          %p1019 = pneg %p175
        $region99: #{tpu_custom_call.1} parent=76 // pred_check_branch
          %1021 = sbr.rel (%p1019) target = $region101
        $region100: #{tpu_custom_call.1} parent=76 // pred_region
          %s1022 = smul.u32 16, %s27
          %s1024 = ssub.s32 2048, 2048
          %1025 = vsyncadd %s1015, %s1024
          %s1026 = smul.addr %s1022, 128
          %s1027 = scalar_lea.hbm %s5, %s1026
          %s1028 = sshll.u32 %s1018, 4
          %s1029 = int_to_ptr.vmem [resolvable:$true] %s1028
          %1034 = dma.vmem_to_hbm [thread:$0]  %s1029, 2048, %s1027, %s1015, 128, 128, 8
        $region101: #{tpu_custom_call.1} parent=76 // pred_fallthru
          _
      $region77: #{tpu_custom_call.1} parent=5 // pred_fallthru
        _
      %p1035 = scmp.le.s32.totalorder 2, %s18
      // Predicated region
      $region102: #{tpu_custom_call.1} parent=5 // pred_check
        %p1036 = pneg %p1035
      $region103: #{tpu_custom_call.1} parent=5 // pred_check_branch
        %1038 = sbr.rel (%p1036) target = $region105
      $region104: #{tpu_custom_call.1} parent=5 // pred_region
        %s1039 = ssub.s32 %s18, 2
        // Predicated region
        $region106: #{tpu_custom_call.1} parent=104 // pred_check
          %p1040 = pneg %p181
        $region107: #{tpu_custom_call.1} parent=104 // pred_check_branch
          %1042 = sbr.rel (%p1040) target = $region109
        $region108: #{tpu_custom_call.1} parent=104 // pred_region
          %s1043 = sand.u32 %s166, 1
          %s1044 = scalar_lea.sflag [#allocation6], %s1043
          %s1045 = sand.u32 %s166, 1
          %s1046 = smul.addr %s1045, 128
          %s1047 = scalar_lea.vmem [#allocation9], %s1046
          %1048 = dma.done %s1044, 2048
        $region109: #{tpu_custom_call.1} parent=104 // pred_fallthru
          _
      $region105: #{tpu_custom_call.1} parent=5 // pred_fallthru
        _
    $region6: #{tpu_custom_call.1} parent=1 // loop_footer
      %s22 = sadd.s32 1, %s18
    $region7: #{tpu_custom_call.1} parent=1 // loop_footer_branch
      %17 = sbr.rel target = $region3
    $region8: #{tpu_custom_call.1} parent=1 // loop_exit
      _
    %1049 = vsyncpa [#allocation5], 1
    %s1050 = scalar_lea.sflag [#allocation5], 1
    %1051 = vsyncpa %s1050, 1
    %1052 = vsyncpa [#allocation8], 1
    %1053 = vsyncpa [#allocation6], 1
    %s1054 = scalar_lea.sflag [#allocation6], 1
    %1055 = vsyncpa %s1054, 1

</llo_original>
